<compile_context>
chip_gen: v6e
topology: v6e:2x2x1
jax: 0.10.0
libtpu: 0.0.40
codegen_flags: <defaults>
</compile_context>

<pallas_src>
import jax
import jax.numpy as jnp
from jax import lax
from jax.experimental import pallas as pl
from jax.experimental.pallas import tpu as pltpu


_LANE = 128
_SUBLANE = 8
_TINY_ELEMS = 1 << 16            # below this, plain XLA beats pallas_call overhead
_X_TILE_TARGET_BYTES = 4 << 20   # per-buffer x tile target (2-8 MiB sweet spot)


def _heads_kernel(x_ref, wt_ref, bt_ref, o_ref):
    """One batch tile of every head, stored lane-dense.

    x_ref : (TB, D)      streamed batch tile
    wt_ref: (E_pad, D)   all head weights (transposed), VMEM-resident
    bt_ref: (E_pad, 1)   all head biases (f32), VMEM-resident
    o_ref : (E_pad, TB)  output slab; TB (>=128-multiple or full B) on lanes
    """
    # (E_pad, D) . (TB, D)^T -> (E_pad, TB), f32 accumulation on the MXU.
    acc = lax.dot_general(
        wt_ref[...], x_ref[...],
        dimension_numbers=(((1,), (1,)), ((), ())),
        preferred_element_type=jnp.float32)
    o_ref[...] = (acc + bt_ref[...]).astype(o_ref.dtype)


def _vmem_limit_bytes():
    """Generation-aware VMEM budget: ~75% of physical, capped at 100 MiB."""
    cap = 64 * 1024 * 1024
    try:
        cap = int(getattr(pltpu.get_tpu_info(), "vmem_capacity_bytes", cap))
    except Exception:
        pass
    return min(cap * 3 // 4, 100 * 1024 * 1024)


def _choose_tb(batch, row_bytes, vmem_limit):
    """Batch tile: as large as the VMEM budget allows, multiple of 128,
    but never so large that fewer than 2 grid tiles exist when B >= 256
    (so v7x's two TensorCores both get work)."""
    x_tile_budget = min(_X_TILE_TARGET_BYTES, vmem_limit // 4)
    tb = max(_LANE, (x_tile_budget // max(row_bytes, 1)) // _LANE * _LANE)
    if batch >= 2 * _LANE:
        half = -(-batch // 2)                 # ceil(B/2)
        half_up = -(-half // _LANE) * _LANE   # round up to a lane multiple
        tb = min(tb, half_up)
    if tb >= batch:
        tb = batch                            # single full-extent block (legal)
    return tb
    # TODO(synk): for very large D (a (128, D) double-buffered f32 tile no
    # longer fitting the budget), add a K-axis ("arbitrary") grid dimension
    # with an (E_pad, TB) f32 accumulator scratch instead of shrinking TB.


def linear_pallas(x, w, b, *, min_pallas_elems=_TINY_ELEMS):
    """y = x @ w + b  via a batch-gridded, lane-dense Pallas TPU kernel.

    x: (B, D)   w: (D, E)   b: (1, E) or (E,)   ->   (B, E), dtype of x.
    """
    B, D = x.shape
    E = w.shape[1]
    out_dtype = x.dtype

    w = w.astype(x.dtype)             # tiny; keeps the matmul in x's dtype
    b = jnp.asarray(b, jnp.float32)   # bias is added in f32 inside the kernel

    if B * D < min_pallas_elems:
        # pallas_call fixed cost (launch + pipeline prologue) dwarfs sub-µs
        # work; a fused XLA dot is strictly faster for these shapes.
        y = jnp.dot(x, w, preferred_element_type=jnp.float32) + b.reshape(1, E)
        return y.astype(out_dtype)

    # Heads transposed + zero-padded to a sublane multiple: every block is
    # (8,128)-aligned and output stores are unmasked, lane-dense vst.
    E_pad = -(-E // _SUBLANE) * _SUBLANE
    wt = jnp.zeros((E_pad, D), w.dtype).at[:E].set(w.T)
    bt = jnp.zeros((E_pad, 1), jnp.float32).at[:E, 0].set(b.reshape(-1))

    vmem_limit = _vmem_limit_bytes()
    TB = _choose_tb(B, D * x.dtype.itemsize, vmem_limit)
    grid = (pl.cdiv(B, TB),)

    cost = pl.CostEstimate(
        flops=2 * B * D * E_pad,
        transcendentals=0,
        bytes_accessed=(B * D * x.dtype.itemsize
                        + E_pad * D * w.dtype.itemsize
                        + E_pad * 4
                        + E_pad * B * jnp.dtype(out_dtype).itemsize),
    )

    y_t = pl.pallas_call(
        _heads_kernel,
        out_shape=jax.ShapeDtypeStruct((E_pad, B), out_dtype),
        grid_spec=pltpu.PrefetchScalarGridSpec(
            num_scalar_prefetch=0,
            grid=grid,
            in_specs=[
                # x: streamed per batch tile (double-buffered by Pallas).
                # If profiling shows exposed DMA, add pipeline_mode=pl.Buffered(3).
                pl.BlockSpec((TB, D), lambda i: (i, 0)),
                pl.BlockSpec((E_pad, D), lambda i: (0, 0)),   # wt: VMEM-resident
                pl.BlockSpec((E_pad, 1), lambda i: (0, 0)),   # bt: VMEM-resident
            ],
            out_specs=pl.BlockSpec((E_pad, TB), lambda i: (0, i)),
        ),
        compiler_params=pltpu.CompilerParams(
            dimension_semantics=("parallel",),   # shard batch tiles across TCs
            vmem_limit_bytes=vmem_limit,         # generation-aware budget
        ),
        cost_estimate=cost,
    )(x, wt, bt)

    # Tiny layout plumbing back to (B, E) in the wrapper (B*E elements only).
    return y_t[:E].T


class FairLinearPallas:
    """JAX/Pallas port of FairLinear(dim, num_envs).

    All heads live in one fused weight matrix:
        column 0            -> g    (Linear(dim, 1))
        columns 1..num_envs -> f[i] (Linear(dim, 1) each)
    """

    def __init__(self, dim, num_envs, key):
        self.dim = dim
        self.num_envs = num_envs
        bound = 1.0 / (dim ** 0.5)   # PyTorch nn.Linear default init range

        k_w, k_b = jax.random.split(key, 2)
        self.w_all = jax.random.uniform(
            k_w, (dim, 1 + num_envs), jnp.float32, -bound, bound)
        self.b_all = jax.random.uniform(
            k_b, (1, 1 + num_envs), jnp.float32, -bound, bound)

    # --- convenience views on the fused parameters --------------------------
    @property
    def g_w(self):
        return self.w_all[:, :1]

    @property
    def g_b(self):
        return self.b_all[:, :1]

    @property
    def f_w(self):
        return self.w_all[:, 1:]

    @property
    def f_b(self):
        return self.b_all[:, 1:]

    # --- forward -------------------------------------------------------------
    def __call__(self, x, pred=False):
        if pred:
            # g(x): one kernel (or XLA fallback for tiny shapes).
            return linear_pallas(x, self.g_w, self.g_b)
        else:
            # All f[i](x) in one fused call; the PyTorch forward discards the
            # results and returns None.  The discarded value is DCE'd under
            # jax.jit (return-value semantics match PyTorch exactly).
            _ = linear_pallas(x, self.f_w, self.f_b)
            return None

    def f_all(self, x):
        """All per-env heads fused into one kernel call: (B, num_envs)."""
        return linear_pallas(x, self.f_w, self.f_b)

    def heads_all(self, x):
        """g and every f head in a single call: (B, 1 + num_envs).
        Column 0 is g(x); columns 1.. are f[i](x)."""
        return linear_pallas(x, self.w_all, self.b_all)


if __name__ == "__main__":
    key = jax.random.PRNGKey(0)
    k_param, k_x, k_big = jax.random.split(key, 3)

    # Small shapes consistent with the module.
    batch, dim, num_envs = 8, 32, 4
    model = FairLinearPallas(dim, num_envs, k_param)
    x = jax.random.normal(k_x, (batch, dim), jnp.float32)

    # pred=True path (tiny shapes -> XLA fallback by design).
    y_g = jax.block_until_ready(model(x, pred=True))
    assert y_g.shape == (batch, 1)
    ref_g = x @ model.g_w + model.g_b
    assert jnp.allclose(y_g, ref_g, atol=1e-5)

    # pred=False path returns None, matching PyTorch.
    assert model(x, pred=False) is None

    # Force the Pallas kernel on the same small shapes (full-extent block).
    y_g_pl = jax.block_until_ready(
        linear_pallas(x, model.g_w, model.g_b, min_pallas_elems=0))
    assert jnp.allclose(y_g_pl, ref_g, atol=1e-5)

    y_f_pl = jax.block_until_ready(
        linear_pallas(x, model.f_w, model.f_b, min_pallas_elems=0))
    ref_f = x @ model.f_w + model.f_b
    assert jnp.allclose(y_f_pl, ref_f, atol=1e-5)

    # Larger batch exercises the batch grid (>=2 tiles, partial last block).
    B2, D2 = 2208, 128
    model2 = FairLinearPallas(D2, num_envs, k_param)
    x2 = jax.random.normal(k_big, (B2, D2), jnp.float32)
    y2 = jax.block_until_ready(model2.heads_all(x2))
    ref2 = x2 @ model2.w_all + model2.b_all
    assert jnp.allclose(y2, ref2, atol=1e-4)

    # bf16-at-rest input: no wrapper-side cast of x, only the tiny w is cast.
    x2_bf16 = x2.astype(jnp.bfloat16)
    y2_bf16 = jax.block_until_ready(model2.heads_all(x2_bf16))
    ref2_bf16 = (x2_bf16.astype(jnp.float32)
                 @ model2.w_all.astype(jnp.bfloat16).astype(jnp.float32)
                 + model2.b_all)
    assert y2_bf16.dtype == jnp.bfloat16
    assert jnp.allclose(y2_bf16.astype(jnp.float32), ref2_bf16, atol=5e-2)

    print("KERNEL_OK")
</pallas_src>

<mosaic_0001>
module attributes {stable_mosaic.version = 11 : i64} {
  func.func @_heads_kernel(%arg0: i32, %arg1: memref<8x32xf32, #tpu.memory_space<vmem>>, %arg2: memref<8x32xf32, #tpu.memory_space<vmem>>, %arg3: memref<8x1xf32, #tpu.memory_space<vmem>>, %arg4: memref<8x8xf32, #tpu.memory_space<vmem>>) attributes {dimension_semantics = [#tpu.dimension_semantics<parallel>], iteration_bounds = array<i64: 1>, scalar_prefetch = 0 : i64, scratch_operands = 0 : i64, tpu.core_type = #tpu.core_type<tc>, window_params = [{transform_indices = @transform_0, window_bounds = array<i64: 8, 32>}, {pipeline_mode = #tpu.pipeline_mode<synchronous>, transform_indices = @transform_1, window_bounds = array<i64: 8, 32>}, {pipeline_mode = #tpu.pipeline_mode<synchronous>, transform_indices = @transform_2, window_bounds = array<i64: 8, 1>}, {transform_indices = @transform_3, window_bounds = array<i64: 8, 8>}]} {
    %c0 = arith.constant 0 : index
    %c0_0 = arith.constant 0 : index
    %0 = vector.load %arg2[%c0, %c0_0] : memref<8x32xf32, #tpu.memory_space<vmem>>, vector<8x32xf32>
    %c0_1 = arith.constant 0 : index
    %c0_2 = arith.constant 0 : index
    %1 = vector.load %arg1[%c0_1, %c0_2] : memref<8x32xf32, #tpu.memory_space<vmem>>, vector<8x32xf32>
    %cst = arith.constant dense<0.000000e+00> : vector<8x8xf32>
    %2 = tpu.matmul %0, %1, %cst {dimension_numbers = #tpu.dot_dimension_numbers<[1], [1], [0], [0], [0, 0, 1, 0], [], []>} : vector<8x32xf32>, vector<8x32xf32>, vector<8x8xf32> -> vector<8x8xf32>
    %c0_3 = arith.constant 0 : index
    %c0_4 = arith.constant 0 : index
    %3 = vector.load %arg3[%c0_3, %c0_4] : memref<8x1xf32, #tpu.memory_space<vmem>>, vector<8x1xf32>
    %4 = vector.broadcast %3 : vector<8x1xf32> to vector<8x8xf32>
    %5 = arith.addf %2, %4 : vector<8x8xf32>
    %c0_5 = arith.constant 0 : index
    %c0_6 = arith.constant 0 : index
    %6 = vector.load %arg4[%c0_5, %c0_6] : memref<8x8xf32, #tpu.memory_space<vmem>>, vector<8x8xf32>
    tpu.vector_store %arg4[%c0_5, %c0_6], %5 {strides = array<i32>} : memref<8x8xf32, #tpu.memory_space<vmem>>, vector<8x8xf32>,
    return
  }
  func.func @transform_0(%arg0: i32) -> (i32, i32) {
    %c0_i32 = arith.constant 0 : i32
    %c0_i32_0 = arith.constant 0 : i32
    return %arg0, %c0_i32 : i32, i32
  }
  func.func @transform_1(%arg0: i32) -> (i32, i32) {
    %c0_i32 = arith.constant 0 : i32
    %c0_i32_0 = arith.constant 0 : i32
    %c0_i32_1 = arith.constant 0 : i32
    return %c0_i32, %c0_i32_0 : i32, i32
  }
  func.func @transform_2(%arg0: i32) -> (i32, i32) {
    %c0_i32 = arith.constant 0 : i32
    %c0_i32_0 = arith.constant 0 : i32
    %c0_i32_1 = arith.constant 0 : i32
    return %c0_i32, %c0_i32_0 : i32, i32
  }
  func.func @transform_3(%arg0: i32) -> (i32, i32) {
    %c0_i32 = arith.constant 0 : i32
    %c0_i32_0 = arith.constant 0 : i32
    return %c0_i32, %arg0 : i32, i32
  }
}

</mosaic_0001>

<llo_original>
// kernel: tpu_custom_call.1
$region0: #{tpu_custom_call.1}
  #allocation0 [shape = 'u32[]', space=smem, size = 0x4, offset = 0x4, fixed_abs, tag = 'smem constant byte address 0x4 - core index']
  #allocation1 [shape = 'u32[144,128]{1,0:T(1,128)}', space=vmem, size = 0x12000, scoped, tag = 'internal scratch']
  %s0 = inlined_call_operand.vmem [shape: f32[8,32], index: 0, kind: input, shape index: {}]
  %s1 = inlined_call_operand.hbm [shape: f32[8,32], index: 1, kind: input, shape index: {}]
  %s2 = inlined_call_operand.vmem [shape: f32[8,1], index: 2, kind: input, shape index: {}]
  %s3 = inlined_call_operand.hbm [shape: f32[8,8], index: 3, kind: output, shape index: {}]
  %s4 = sld [smem:[#allocation0]]
  $region26: #{tpu_custom_call.1} parent=0
    _
  %s6 = ssub.s32 1, %s4
  %s7 = scalar_select 0, %s6, %s4
  $region1: #{tpu_custom_call.1} parent=0
    #allocation2 [shape = 'u8[4096]{0}', space=vmem, size = 0x1000, scoped, tag = 'input window, operand 1, single buffered']
    #allocation3 [shape = 's32[1]{0}', space=sflag, size = 0x4, scoped, tag = 'scoped memory for tpu_custom_call.1']
    #allocation4 [shape = 's32[1]{0}', space=sflag, size = 0x4, scoped, tag = 'scoped memory for tpu_custom_call.1']
    #allocation5 [shape = 'u8[4096]{0}', space=vmem, size = 0x1000, scoped, tag = 'output window, operand 0, single buffered']
    %8 = vsyncpa [#allocation3], 0
    %9 = vsyncpa [#allocation4], 0
    // Predicated region
    $region2: #{tpu_custom_call.1} parent=1 // pred_check
      _
    $region3: #{tpu_custom_call.1} parent=1 // pred_check_branch
      %11 = sbr.rel (0) target = $region5
    $region4: #{tpu_custom_call.1} parent=1 // pred_region
      _
    $region5: #{tpu_custom_call.1} parent=1 // pred_fallthru
      _
    // Predicated region
    $region6: #{tpu_custom_call.1} parent=1 // pred_check
      _
    $region7: #{tpu_custom_call.1} parent=1 // pred_check_branch
      %13 = sbr.rel (0) target = $region9
    $region8: #{tpu_custom_call.1} parent=1 // pred_region
      %s15 = ssub.s32 128, 128
      %16 = vsyncadd [#allocation3], %s15
      %s18 = sshll.u32 [#allocation2], 4
      %s19 = int_to_ptr.vmem [resolvable:$true] %s18
      %21 = dma.hbm_to_vmem [thread:$0]  %s1, 128, %s19, [#allocation3]
    $region9: #{tpu_custom_call.1} parent=1 // pred_fallthru
      _
    // Predicated region
    $region10: #{tpu_custom_call.1} parent=1 // pred_check
      _
    $region11: #{tpu_custom_call.1} parent=1 // pred_check_branch
      %23 = sbr.rel (0) target = $region13
    $region12: #{tpu_custom_call.1} parent=1 // pred_region
      _
    $region13: #{tpu_custom_call.1} parent=1 // pred_fallthru
      _
    // Predicated region
    $region14: #{tpu_custom_call.1} parent=1 // pred_check
      _
    $region15: #{tpu_custom_call.1} parent=1 // pred_check_branch
      %25 = sbr.rel (0) target = $region17
    $region16: #{tpu_custom_call.1} parent=1 // pred_region
      %26 = dma.done [#allocation3], 128
    $region17: #{tpu_custom_call.1} parent=1 // pred_fallthru
      _
    %v27 = vld [vmem:[#allocation2] sm:$0xff]
    %v28 = vld [vmem:[%s0] sm:$0xff]
    %v29 = vld [vmem:[%s2] sm:$0xff]
    %31 = vset.pattern.permute.xlu0 0
    %32 = vperm.xlu0 %31, %v29
    %v33 = vpop.permute.xlu0 %32
    %vm35 = vcmask 261120
    %v37 = vsel %vm35, %v27, 0
    %v40 = vsel %vm35, %v28, 0
    %42 = vmatprep.subr.mxu0 0.0
    %43 = vmatpush1.xpose.msra.mxu0 0.0
    %44 = vmatprep.subr.mxu0 0.0
    %45 = vmatpush1.xpose.msra.mxu0 0.0
    %46 = vmatprep.subr.mxu0 0.0
    %47 = vmatpush1.xpose.msra.mxu0 0.0
    %48 = vmatprep.subr.mxu0 0.0
    %49 = vmatpush1.xpose.msra.mxu0 0.0
    %50 = vmatprep.subr.mxu0 0.0
    %51 = vmatpush1.xpose.msra.mxu0 0.0
    %52 = vmatprep.subr.mxu0 0.0
    %53 = vmatpush1.xpose.msra.mxu0 0.0
    %54 = vmatprep.subr.mxu0 0.0
    %55 = vmatpush1.xpose.msra.mxu0 0.0
    %56 = vmatprep.subr.mxu0 0.0
    %57 = vmatpush1.xpose.msra.mxu0 0.0
    %58 = vmatprep.subr.mxu0 0.0
    %59 = vmatpush1.xpose.msra.mxu0 0.0
    %60 = vmatprep.subr.mxu0 0.0
    %61 = vmatpush1.xpose.msra.mxu0 0.0
    %62 = vmatprep.subr.mxu0 0.0
    %63 = vmatpush1.xpose.msra.mxu0 0.0
    %64 = vmatprep.subr.mxu0 0.0
    %65 = vmatpush1.xpose.msra.mxu0 0.0
    %66 = vmatprep.subr.mxu0 0.0
    %67 = vmatpush1.xpose.msra.mxu0 0.0
    %68 = vmatprep.subr.mxu0 0.0
    %69 = vmatpush1.xpose.msra.mxu0 0.0
    %70 = vmatprep.subr.mxu0 0.0
    %71 = vmatpush1.xpose.msra.mxu0 0.0
    %72 = vmatprep.subr.mxu0 0.0
    %73 = vmatpush1.xpose.msra.mxu0 %v40
    %74 = vmatprep.subr.mxu0 0.0
    %75 = vmatpush2.xpose.msra.mxu0 0.0
    %76 = vmatprep.subr.mxu0 0.0
    %77 = vmatpush2.xpose.msra.mxu0 0.0
    %78 = vmatprep.subr.mxu0 0.0
    %79 = vmatpush2.xpose.msra.mxu0 0.0
    %80 = vmatprep.subr.mxu0 0.0
    %81 = vmatpush2.xpose.msra.mxu0 0.0
    %82 = vmatprep.subr.mxu0 0.0
    %83 = vmatpush2.xpose.msra.mxu0 0.0
    %84 = vmatprep.subr.mxu0 0.0
    %85 = vmatpush2.xpose.msra.mxu0 0.0
    %86 = vmatprep.subr.mxu0 0.0
    %87 = vmatpush2.xpose.msra.mxu0 0.0
    %88 = vmatprep.subr.mxu0 0.0
    %89 = vmatpush2.xpose.msra.mxu0 0.0
    %90 = vmatprep.subr.mxu0 0.0
    %91 = vmatpush2.xpose.msra.mxu0 0.0
    %92 = vmatprep.subr.mxu0 0.0
    %93 = vmatpush2.xpose.msra.mxu0 0.0
    %94 = vmatprep.subr.mxu0 0.0
    %95 = vmatpush2.xpose.msra.mxu0 0.0
    %96 = vmatprep.subr.mxu0 0.0
    %97 = vmatpush2.xpose.msra.mxu0 0.0
    %98 = vmatprep.subr.mxu0 0.0
    %99 = vmatpush2.xpose.msra.mxu0 0.0
    %100 = vmatprep.subr.mxu0 0.0
    %101 = vmatpush2.xpose.msra.mxu0 0.0
    %102 = vmatprep.subr.mxu0 0.0
    %103 = vmatpush2.xpose.msra.mxu0 0.0
    %104 = vmatprep.subr.mxu0 0.0
    %105 = vmatpush2.xpose.msra.mxu0 0.0
    %106 = vmatprep.mubr.f32.mxu0 0.0
    %107 = vmatmul.mubr.f32.gmra.mxu0 %v37
    %v108 = vpop.f32.mrf.mxu0
    %v109 = vadd.f32 %v33, %v108
    %v110 = vpop.f32.mrf.mxu0
    %111 = vdwg.mxu0
    %vm112 = vcmask 64512
    %113 = vst.msk [vmem:[#allocation5] sm:$0xff] %vm112, %v109
    // Predicated region
    $region18: #{tpu_custom_call.1} parent=1 // pred_check
      _
    $region19: #{tpu_custom_call.1} parent=1 // pred_check_branch
      %115 = sbr.rel (0) target = $region21
    $region20: #{tpu_custom_call.1} parent=1 // pred_region
      %s117 = ssub.s32 128, 128
      %118 = vsyncadd [#allocation4], %s117
      %s120 = sshll.u32 [#allocation5], 4
      %s121 = int_to_ptr.vmem [resolvable:$true] %s120
      %123 = dma.vmem_to_hbm [thread:$0]  %s121, 128, %s3, [#allocation4]
    $region21: #{tpu_custom_call.1} parent=1 // pred_fallthru
      _
    // Predicated region
    $region22: #{tpu_custom_call.1} parent=1 // pred_check
      _
    $region23: #{tpu_custom_call.1} parent=1 // pred_check_branch
      %125 = sbr.rel (0) target = $region25
    $region24: #{tpu_custom_call.1} parent=1 // pred_region
      %126 = dma.done [#allocation4], 128
    $region25: #{tpu_custom_call.1} parent=1 // pred_fallthru
      _
    %127 = vsyncpa [#allocation3], 1
    %128 = vsyncpa [#allocation4], 1

</llo_original>
